<compile_context>
chip_gen: v7x
topology: tpu7x:2x2x1
jax: 0.10.0
libtpu: 0.0.40
codegen_flags: <defaults>
</compile_context>

<pallas_src>
import functools

import jax
import jax.numpy as jnp
from jax import lax
from jax.experimental import pallas as pl
from jax.experimental.pallas import tpu as pltpu

_LANE = 128
_CHUNK_ELEMS = 16384        # target elements per inner accumulation chunk
_MAX_CHUNK_LANES = 4096
_MIN_CHUNK_LANES = 512


def _row_sq_kernel(g_ref, o_ref, acc_ref, *, true_d, mask_possible):
    """Per-row partial sum of squares of one (tb, td) gradient block.

    g_ref:   (tb, td) block of the (B, D) gradients (input dtype, streamed).
    o_ref:   (tb, 1) per-row sum of squares for this reduction shard,
             written once on the last column step.
    acc_ref: (tb, chunk) f32 lane-resident accumulator scratch.
    """
    d = pl.program_id(2)
    nd_ps = pl.num_programs(2)
    tb, td = g_ref.shape
    chunk = acc_ref.shape[1]
    n_chunks = td // chunk

    @pl.when(d == 0)
    def _():
        acc_ref[...] = jnp.zeros_like(acc_ref)

    # Global column offset of this block: (shard * steps_per_shard + step)*td.
    # NOTE: this is the *unclamped* offset; the index_map may clamp the DMA
    # for fully-out-of-range split steps -- the mask below zeroes those.
    col0 = (pl.program_id(0) * nd_ps + d) * td

    def step(off, masked):
        g = g_ref[:, pl.ds(off, chunk)].astype(jnp.float32)
        if masked:
            col = col0 + off + lax.broadcasted_iota(jnp.int32, (tb, chunk), 1)
            g = jnp.where(col < true_d, g, 0.0)
        acc_ref[...] += g * g            # pure VPU multiply-add, no lane reduce

    def accumulate(masked):
        if n_chunks == 1:
            step(0, masked)
        else:
            def body(i, carry):
                step(pl.multiple_of(i * chunk, chunk), masked)
                return carry
            lax.fori_loop(0, n_chunks, body, 0, unroll=min(n_chunks, 8))

    if mask_possible:
        # Only the block that overhangs D pays for iota/compare/select.
        @pl.when(col0 + td <= true_d)
        def _():
            accumulate(False)

        @pl.when(col0 + td > true_d)
        def _():
            accumulate(True)
    else:
        accumulate(False)

    @pl.when(d == nd_ps - 1)
    def _():
        # Single cross-lane reduce per batch tile (epilogue only).
        o_ref[...] = jnp.sum(acc_ref[...], axis=1, keepdims=True)


def gradient_norm_loss_pallas(gradients_flat: jax.Array, k: float = 1.0, *,
                              block_bytes: int = 8 * 1024 * 1024,
                              tb_target: int = 32,
                              split_reduction_for_two_cores: bool = True) -> jax.Array:
    """gradients_flat: (B, D) float array. Returns the scalar f32 loss."""
    B, D = gradients_flat.shape
    itemsize = jnp.dtype(gradients_flat.dtype).itemsize

    # --- batch tile: sublane-aligned to the dtype packing --------------------
    sub = {4: 8, 2: 16, 1: 32}.get(itemsize, 8)
    if B <= sub:
        tb = B                                         # full-extent rows (exempt)
    else:
        tb = sub * max(1, min(tb_target // sub, B // sub))
    nb = pl.cdiv(B, tb)
    b_pad = nb * tb

    # --- column tile: inner chunk width + DMA block from a byte budget -------
    chunk = min(_MAX_CHUNK_LANES,
                max(_MIN_CHUNK_LANES, ((_CHUNK_ELEMS // tb) // _LANE) * _LANE))
    if D <= chunk:
        td = D                                         # full-extent cols (exempt)
        chunk = D
    else:
        cols = max(chunk, (block_bytes // (tb * itemsize)) // chunk * chunk)
        d_cover = pl.cdiv(D, chunk) * chunk            # D rounded up; no HBM pad
        td = min(cols, d_cover)
    nd = pl.cdiv(D, td)

    # --- optional 2-way split of the reduction axis (keeps both v7x TCs fed
    #     when there is only a single batch tile) -----------------------------
    ns = 2 if (split_reduction_for_two_cores and nb == 1 and nd >= 2) else 1
    nd_ps = pl.cdiv(nd, ns)
    mask_possible = (D % td != 0) or (ns * nd_ps != nd)

    if ns == 1:
        in_map = lambda s, b, d: (b, d)
    else:
        last_col_block = nd - 1
        # Clamp so a shard's overhanging step re-reads the last valid block;
        # the in-kernel mask (driven by the unclamped offset) zeroes it out.
        in_map = lambda s, b, d: (b, jnp.minimum(s * nd_ps + d, last_col_block))

    blk_bytes = tb * td * itemsize
    vmem_limit = int(min(2 * blk_bytes + (24 << 20), 112 << 20))

    partial = pl.pallas_call(
        functools.partial(_row_sq_kernel, true_d=D, mask_possible=mask_possible),
        out_shape=jax.ShapeDtypeStruct((ns, b_pad, 1), jnp.float32),
        grid=(ns, nb, nd_ps),
        in_specs=[pl.BlockSpec((tb, td), in_map)],
        out_specs=pl.BlockSpec((None, tb, 1), lambda s, b, d: (s, b, 0)),
        scratch_shapes=[pltpu.VMEM((tb, chunk), jnp.float32)],
        compiler_params=pltpu.CompilerParams(
            dimension_semantics=("parallel", "parallel", "arbitrary"),
            vmem_limit_bytes=vmem_limit),
        cost_estimate=pl.CostEstimate(
            flops=2 * B * D,
            transcendentals=0,
            bytes_accessed=B * D * itemsize + ns * b_pad * 4),
    )(gradients_flat)

    # Tiny O(B) finalisation in the wrapper, on the real batch rows only.
    row_sq = jnp.sum(partial[:, :B, 0], axis=0)        # (B,)
    diff = jnp.sqrt(row_sq) - jnp.float32(k)
    return jnp.mean(diff * diff)


def gradient_norm_loss(net_input: jax.Array, net_fn, k: float = 1.0) -> jax.Array:
    """Full module forward. net_input: NCHW array, net_fn: net_input -> output."""
    # TODO(synk): torch.autograd.grad through an arbitrary external network has
    # no in-kernel Pallas equivalent; the VJP is computed with jax.vjp here.
    output, vjp_fn = jax.vjp(net_fn, net_input)
    (gradients,) = vjp_fn(jnp.ones_like(output))
    B = net_input.shape[0]
    return gradient_norm_loss_pallas(gradients.reshape(B, -1), k=k)


if __name__ == "__main__":
    key = jax.random.PRNGKey(0)
    k_x, k_w, k_a, k_b, k_c, k_d = jax.random.split(key, 6)

    def ref_loss(g, kk):
        g32 = g.astype(jnp.float32)
        return jnp.mean((jnp.sqrt(jnp.sum(g32 * g32, axis=1)) - kk) ** 2)

    # Full module path: tiny deterministic "network" (1x1 conv + tanh), NCHW.
    B, Cc, H, W = 2, 4, 16, 16
    x = jax.random.normal(k_x, (B, Cc, H, W), dtype=jnp.float32)
    w = 0.1 * jax.random.normal(k_w, (Cc, 4), dtype=jnp.float32)

    def net_fn(inp):
        return jnp.tanh(jnp.einsum("nchw,co->nohw", inp, w))

    loss = jax.block_until_ready(gradient_norm_loss(x, net_fn, k=1.0))
    out_ref, vjp_fn = jax.vjp(net_fn, x)
    (g_ref,) = vjp_fn(jnp.ones_like(out_ref))
    g_ref = g_ref.reshape(B, -1)
    assert jnp.allclose(loss, ref_loss(g_ref, 1.0), rtol=1e-5, atol=1e-6), (
        loss, ref_loss(g_ref, 1.0))

    # Ragged D tail inside a single block (D not a multiple of 128), no pad.
    g2 = jax.random.normal(k_a, (3, 4000), dtype=jnp.float32)
    l2 = jax.block_until_ready(gradient_norm_loss_pallas(g2, k=0.5))
    assert jnp.allclose(l2, ref_loss(g2, 0.5), rtol=1e-5, atol=1e-6), (
        l2, ref_loss(g2, 0.5))

    # Multi-step reduction + even 2-way split of the reduction axis
    # (single batch tile -> both v7x TensorCores get grid work).
    g3 = jax.random.normal(k_b, (3, 12400), dtype=jnp.float32)
    l3 = jax.block_until_ready(
        gradient_norm_loss_pallas(g3, k=0.5, block_bytes=3 * 4096 * 4))
    assert jnp.allclose(l3, ref_loss(g3, 0.5), rtol=1e-5, atol=1e-6), (
        l3, ref_loss(g3, 0.5))

    # Odd number of column blocks: split shards overhang -> index_map clamp +
    # fully-masked overhang step.
    g4 = jax.random.normal(k_c, (3, 20000), dtype=jnp.float32)
    l4 = jax.block_until_ready(
        gradient_norm_loss_pallas(g4, k=0.5, block_bytes=3 * 4096 * 4))
    assert jnp.allclose(l4, ref_loss(g4, 0.5), rtol=1e-5, atol=1e-6), (
        l4, ref_loss(g4, 0.5))

    # bf16 gradients streamed as-is (16-row sublane packing) + masked
    # multi-chunk inner loop.
    g5 = jax.random.normal(k_d, (16, 4100), dtype=jnp.float32).astype(jnp.bfloat16)
    l5 = jax.block_until_ready(gradient_norm_loss_pallas(g5, k=1.0))
    assert jnp.allclose(l5, ref_loss(g5, 1.0), rtol=1e-4, atol=1e-5), (
        l5, ref_loss(g5, 1.0))

    # Unmasked multi-chunk inner loop (D an exact multiple of the block).
    g6 = jax.random.normal(k_d, (16, 8192), dtype=jnp.float32)
    l6 = jax.block_until_ready(gradient_norm_loss_pallas(g6, k=1.0))
    assert jnp.allclose(l6, ref_loss(g6, 1.0), rtol=1e-5, atol=1e-6), (
        l6, ref_loss(g6, 1.0))

    print("KERNEL_OK")
</pallas_src>

<mosaic_0001>
module attributes {stable_mosaic.version = 11 : i64} {
  func.func @_row_sq_kernel(%arg0: i32, %arg1: i32, %arg2: i32, %arg3: memref<2x1024xf32, #tpu.memory_space<vmem>>, %arg4: memref<1x2x1xf32, #tpu.memory_space<vmem>>, %arg5: memref<2x1024xf32, #tpu.memory_space<vmem>>) attributes {dimension_semantics = [#tpu.dimension_semantics<parallel>, #tpu.dimension_semantics<parallel>, #tpu.dimension_semantics<arbitrary>], iteration_bounds = array<i64: 1, 1, 1>, scalar_prefetch = 0 : i64, scratch_operands = 1 : i64, tpu.core_type = #tpu.core_type<tc>, window_params = [{transform_indices = @transform_0, window_bounds = array<i64: 2, 1024>}, {transform_indices = @transform_1, window_bounds = array<i64: 1, 2, 1>}]} {
    %c0_i32 = arith.constant 0 : i32
    %0 = arith.cmpi eq, %arg2, %c0_i32 : i32
    %1 = arith.extui %0 : i1 to i32
    %c0_i32_0 = arith.constant 0 : i32
    %2 = arith.cmpi ne, %1, %c0_i32_0 : i32
    scf.if %2 {
      %cst = arith.constant 0.000000e+00 : f32
      %11 = vector.broadcast %cst : f32 to vector<2x1024xf32>
      %c0_8 = arith.constant 0 : index
      %c0_9 = arith.constant 0 : index
      %12 = vector.load %arg5[%c0_8, %c0_9] : memref<2x1024xf32, #tpu.memory_space<vmem>>, vector<2x1024xf32>
      tpu.vector_store %arg5[%c0_8, %c0_9], %11 {strides = array<i32>} : memref<2x1024xf32, #tpu.memory_space<vmem>>, vector<2x1024xf32>,
    } else {
    }
    %c0 = arith.constant 0 : index
    %c0_1 = arith.constant 0 : index
    %3 = vector.load %arg3[%c0, %c0_1] : memref<2x1024xf32, #tpu.memory_space<vmem>>, vector<2x1024xf32>
    %c0_2 = arith.constant 0 : index
    %c0_3 = arith.constant 0 : index
    %4 = vector.load %arg5[%c0_2, %c0_3] : memref<2x1024xf32, #tpu.memory_space<vmem>>, vector<2x1024xf32>
    %5 = arith.mulf %3, %3 : vector<2x1024xf32>
    %6 = arith.addf %4, %5 : vector<2x1024xf32>
    %c0_4 = arith.constant 0 : index
    %c0_5 = arith.constant 0 : index
    %7 = vector.load %arg5[%c0_4, %c0_5] : memref<2x1024xf32, #tpu.memory_space<vmem>>, vector<2x1024xf32>
    tpu.vector_store %arg5[%c0_4, %c0_5], %6 {strides = array<i32>} : memref<2x1024xf32, #tpu.memory_space<vmem>>, vector<2x1024xf32>,
    %c0_i32_6 = arith.constant 0 : i32
    %8 = arith.cmpi eq, %arg2, %c0_i32_6 : i32
    %9 = arith.extui %8 : i1 to i32
    %c0_i32_7 = arith.constant 0 : i32
    %10 = arith.cmpi ne, %9, %c0_i32_7 : i32
    scf.if %10 {
      %c0_8 = arith.constant 0 : index
      %c0_9 = arith.constant 0 : index
      %11 = vector.load %arg5[%c0_8, %c0_9] : memref<2x1024xf32, #tpu.memory_space<vmem>>, vector<2x1024xf32>
      %cst = arith.constant dense<0.000000e+00> : vector<2xf32>
      %12 = vector.multi_reduction <add>, %11, %cst [1] : vector<2x1024xf32> to vector<2xf32>
      %13 = vector.shape_cast %12 : vector<2xf32> to vector<2x1xf32>
      %c0_10 = arith.constant 0 : index
      %c0_11 = arith.constant 0 : index
      %c0_12 = arith.constant 0 : index
      %14 = vector.load %arg4[%c0_10, %c0_11, %c0_12] : memref<1x2x1xf32, #tpu.memory_space<vmem>>, vector<1x2x1xf32>
      %15 = vector.shape_cast %14 : vector<1x2x1xf32> to vector<2x1xf32>
      %16 = vector.shape_cast %13 : vector<2x1xf32> to vector<1x2x1xf32>
      tpu.vector_store %arg4[%c0_10, %c0_11, %c0_12], %16 {strides = array<i32>} : memref<1x2x1xf32, #tpu.memory_space<vmem>>, vector<1x2x1xf32>,
    } else {
    }
    return
  }
  func.func @transform_0(%arg0: i32, %arg1: i32, %arg2: i32) -> (i32, i32) {
    %c0_i32 = arith.constant 0 : i32
    return %arg1, %arg2 : i32, i32
  }
  func.func @transform_1(%arg0: i32, %arg1: i32, %arg2: i32) -> (i32, i32, i32) {
    %c0_i32 = arith.constant 0 : i32
    %c0_i32_0 = arith.constant 0 : i32
    return %arg0, %arg1, %c0_i32 : i32, i32, i32
  }
}

</mosaic_0001>

<llo_original>
// kernel: tpu_custom_call.1
$region0: #{tpu_custom_call.1}
  #allocation0 [shape = 'u32[]', space=smem, size = 0x4, offset = 0x4, fixed_abs, tag = 'smem constant byte address 0x4 - core index']
  #allocation1 [shape = 'u32[144,128]{1,0:T(1,128)}', space=vmem, size = 0x12000, scoped, tag = 'internal scratch']
  #allocation2 [shape = 'f32[2,1024]{1,0:T(2,128)}', space=vmem, size = 0x2000, scoped, tag = 'scratch operand']
  %s0 = inlined_call_operand.hbm [shape: f32[2,1024], index: 0, kind: input, shape index: {}]
  %s1 = inlined_call_operand.vmem [shape: f32[1,2,1], index: 1, kind: output, shape index: {}]
  %s2 = sld [smem:[#allocation0]]
  $region26: #{tpu_custom_call.1} parent=0
    _
  %s4 = ssub.s32 1, %s2
  %s5 = scalar_select 0, %s4, %s2
  $region1: #{tpu_custom_call.1} parent=0
    #allocation3 [shape = 'u8[8192]{0}', space=vmem, size = 0x2000, scoped, tag = 'input window, operand 0, single buffered']
    #allocation4 [shape = 's32[1]{0}', space=sflag, size = 0x4, scoped, tag = 'scoped memory for tpu_custom_call.1']
    %6 = vsyncpa [#allocation4], 0
    // Predicated region
    $region2: #{tpu_custom_call.1} parent=1 // pred_check
      _
    $region3: #{tpu_custom_call.1} parent=1 // pred_check_branch
      %8 = sbr.rel (0) target = $region5
    $region4: #{tpu_custom_call.1} parent=1 // pred_region
      %s10 = ssub.s32 256, 256
      %11 = vsyncadd [#allocation4], %s10
      %s13 = sshll.u32 [#allocation3], 4
      %s14 = int_to_ptr.vmem [resolvable:$true] %s13
      %16 = dma.hbm_to_vmem [thread:$0]  %s0, 256, %s14, [#allocation4]
    $region5: #{tpu_custom_call.1} parent=1 // pred_fallthru
      _
    // Predicated region
    $region6: #{tpu_custom_call.1} parent=1 // pred_check
      _
    $region7: #{tpu_custom_call.1} parent=1 // pred_check_branch
      %18 = sbr.rel (0) target = $region9
    $region8: #{tpu_custom_call.1} parent=1 // pred_region
      %19 = dma.done [#allocation4], 256
    $region9: #{tpu_custom_call.1} parent=1 // pred_fallthru
      _
    %p20 = scmp.eq.s32.totalorder 0, 0
    // Predicated region
    $region10: #{tpu_custom_call.1} parent=1 // pred_check
      %p21 = pneg %p20
    $region11: #{tpu_custom_call.1} parent=1 // pred_check_branch
      %23 = sbr.rel (%p21) target = $region13
    $region12: #{tpu_custom_call.1} parent=1 // pred_region
      %24 = vst [vmem:[#allocation2] sm:$0xff] 0.0
      %25 = vst [vmem:[#allocation2 + $0x8] sm:$0xff] 0.0
    $region13: #{tpu_custom_call.1} parent=1 // pred_fallthru
      _
    %v26 = vld [vmem:[#allocation3] sm:$0xff]
    %v27 = vld [vmem:[#allocation3 + $0x8] sm:$0xff]
    %v28 = vld [vmem:[#allocation2] sm:$0xff]
    %v29 = vld [vmem:[#allocation2 + $0x8] sm:$0xff]
    %v30 = vmul.f32 %v26, %v26
    %v31 = vmul.f32 %v27, %v27
    %v32 = vadd.f32 %v28, %v30
    %v33 = vadd.f32 %v29, %v31
    %34 = vst [vmem:[#allocation2] sm:$0xff] %v32
    %35 = vst [vmem:[#allocation2 + $0x8] sm:$0xff] %v33
    // Predicated region
    $region14: #{tpu_custom_call.1} parent=1 // pred_check
      %p36 = pneg %p20
    $region15: #{tpu_custom_call.1} parent=1 // pred_check_branch
      %38 = sbr.rel (%p36) target = $region17
    $region16: #{tpu_custom_call.1} parent=1 // pred_region
      %v39 = vld [vmem:[#allocation2] sm:$0xff]
      %v40 = vld [vmem:[#allocation2 + $0x8] sm:$0xff]
      %v43 = vcombine.high %v39, %v39
      %v45 = vunpack.c.l.s4 1983009808
      %v46 = vunpack.c.0.s8 %v45
      %v47 = vlaneseq
      %v48 = vshrl.u32 %v47, 7
      %v49 = vsub.s32 %v46, %v48
      %v50 = vrot.slane %v39, %v49
      %v52 = vunpack.c.l.s4 1983009808
      %v53 = vunpack.c.0.s8 %v52
      %v54 = vlaneseq
      %v55 = vshrl.u32 %v54, 7
      %v56 = vsub.s32 %v53, %v55
      %v57 = vrot.slane %v43, %v56
      %v58 = vcombine.high %v50, %v50
      %v59 = vcombine.high %v57, %v57
      %v60 = vcombine.high %v40, %v40
      %v62 = vunpack.c.l.s4 1983009808
      %v63 = vunpack.c.0.s8 %v62
      %v64 = vlaneseq
      %v65 = vshrl.u32 %v64, 7
      %v66 = vsub.s32 %v63, %v65
      %v67 = vrot.slane %v40, %v66
      %v69 = vunpack.c.l.s4 1983009808
      %v70 = vunpack.c.0.s8 %v69
      %v71 = vlaneseq
      %v72 = vshrl.u32 %v71, 7
      %v73 = vsub.s32 %v70, %v72
      %v74 = vrot.slane %v60, %v73
      %v75 = vcombine.high %v67, %v67
      %v76 = vcombine.high %v74, %v74
      %vm85 = vcmask 1041408
      %v86 = vsel %vm85, %v50, 0.0
      %v87 = vsel %vm85, %v58, 0.0
      %v88 = vadd.f32 %v86, %v87
      %v89 = vsel %vm85, %v57, 0.0
      %v90 = vadd.f32 %v88, %v89
      %v91 = vsel %vm85, %v59, 0.0
      %v92 = vadd.f32 %v90, %v91
      %v93 = vsel %vm85, %v67, 0.0
      %v94 = vadd.f32 %v92, %v93
      %v95 = vsel %vm85, %v75, 0.0
      %v96 = vadd.f32 %v94, %v95
      %v97 = vsel %vm85, %v74, 0.0
      %v98 = vadd.f32 %v96, %v97
      %v99 = vsel %vm85, %v76, 0.0
      %v100 = vadd.f32 %v98, %v99
      %101 = vadd.xlane.f32.xlu0 %v100
      %v102 = vpop.xlane.xlu0 %101
      %vm103 = vcmask 1024
      %104 = vst.msk [vmem:[%s1] sm:$0x3] %vm103, %v102
    $region17: #{tpu_custom_call.1} parent=1 // pred_fallthru
      _
    // Predicated region
    $region18: #{tpu_custom_call.1} parent=1 // pred_check
      _
    $region19: #{tpu_custom_call.1} parent=1 // pred_check_branch
      %106 = sbr.rel (0) target = $region21
    $region20: #{tpu_custom_call.1} parent=1 // pred_region
      _
    $region21: #{tpu_custom_call.1} parent=1 // pred_fallthru
      _
    // Predicated region
    $region22: #{tpu_custom_call.1} parent=1 // pred_check
      _
    $region23: #{tpu_custom_call.1} parent=1 // pred_check_branch
      %108 = sbr.rel (0) target = $region25
    $region24: #{tpu_custom_call.1} parent=1 // pred_region
      _
    $region25: #{tpu_custom_call.1} parent=1 // pred_fallthru
      _
    %109 = vsyncpa [#allocation4], 1

</llo_original>
